<compile_context>
chip_gen: v5e
topology: v5e:2x2
jax: 0.10.0
libtpu: 0.0.40
codegen_flags: <defaults>
</compile_context>

<pallas_src>
import functools

import jax
import jax.numpy as jnp
import numpy as np
from jax import lax
from jax.experimental import pallas as pl
from jax.experimental.pallas import tpu as pltpu


def _round_up(x, m):
    return ((x + m - 1) // m) * m


# Contract the last dims of both operands: (TM, D) x (TN, D) -> (TM, TN) == A @ B^T.
_DOT_DNUMS = (((1,), (1,)), ((), ()))


def _edge_masked(sim, row_start, col_start, tm, tn, n_cols):
    """Zero the self-diagonal and padded columns (slow path only)."""
    g_row = row_start + lax.broadcasted_iota(jnp.int32, (tm, tn), 0)
    g_col = col_start + lax.broadcasted_iota(jnp.int32, (tm, tn), 1)
    keep = jnp.logical_and(g_row != g_col, g_col < n_cols)
    return jnp.where(keep, sim, 0.0)


def _lane_block_accumulate(pos_tile, den_tile, pos_acc, den_acc, tn):
    """VPU-only accumulation into lane-dense (TM, 128) scratch buffers."""
    for k in range(tn // 128):
        sl = slice(k * 128, (k + 1) * 128)
        pos_acc[...] += pos_tile[:, sl]
        den_acc[...] += den_tile[:, sl]


def _finalize(out_ref, pos_acc, den_acc, row_start, *, eps, tm, n_rows):
    # Single cross-lane reduce per row tile (not per (i, j) tile).
    pos = jnp.sum(pos_acc[...], axis=1, keepdims=True)   # (TM, 1)
    den = jnp.sum(den_acc[...], axis=1, keepdims=True)   # (TM, 1)
    if eps:
        pos = pos + eps * den                             # sum(sim*(eq+eps))
    row_valid = (row_start + lax.broadcasted_iota(jnp.int32, (tm, 1), 0)) < n_rows
    per_row = jnp.where(row_valid, jnp.log(pos) - jnp.log(den), 0.0)
    # Lane-dense store: one full (1, 8, 128) block of the partial log-sum.
    out_ref[...] = jnp.full(out_ref.shape, jnp.sum(per_row), dtype=jnp.float32)


def _stance_labels_kernel(row_lab_ref, col_lab_ref, anchor_ref, contrast_ref,
                          out_ref, pos_acc, den_acc, *,
                          inv_temp, eps, tm, tn, n_rows, n_cols):
    # Grid scalars hoisted to the top level (never call program_id inside pl.when).
    i = pl.program_id(0)
    j = pl.program_id(1)
    n_j = pl.num_programs(1)
    row_start = i * tm
    col_start = j * tn

    @pl.when(j == 0)
    def _init():
        pos_acc[...] = jnp.zeros_like(pos_acc)
        den_acc[...] = jnp.zeros_like(den_acc)

    logits = lax.dot_general(anchor_ref[...], contrast_ref[...], _DOT_DNUMS,
                             preferred_element_type=jnp.float32)   # MXU
    sim = jnp.exp(logits * inv_temp)                               # EUP
    eq = row_lab_ref[...] == col_lab_ref[...]                      # (TM, TN) bool

    # Slow path only for tiles touching the diagonal (and the ragged last col tile).
    needs_edge = jnp.logical_and(row_start < col_start + tn,
                                 col_start < row_start + tm)
    if n_cols % tn != 0:
        needs_edge = jnp.logical_or(needs_edge, j == n_j - 1)

    @pl.when(needs_edge)
    def _slow():
        s = _edge_masked(sim, row_start, col_start, tm, tn, n_cols)
        _lane_block_accumulate(jnp.where(eq, s, 0.0), s, pos_acc, den_acc, tn)

    @pl.when(jnp.logical_not(needs_edge))
    def _fast():
        _lane_block_accumulate(jnp.where(eq, sim, 0.0), sim, pos_acc, den_acc, tn)

    @pl.when(j == n_j - 1)
    def _done():
        _finalize(out_ref, pos_acc, den_acc, row_start,
                  eps=eps, tm=tm, n_rows=n_rows)


def _stance_mask_kernel(mask_ref, anchor_ref, contrast_ref,
                        out_ref, pos_acc, den_acc, *,
                        inv_temp, tm, tn, n_rows, n_cols):
    i = pl.program_id(0)
    j = pl.program_id(1)
    n_j = pl.num_programs(1)
    row_start = i * tm
    col_start = j * tn

    @pl.when(j == 0)
    def _init():
        pos_acc[...] = jnp.zeros_like(pos_acc)
        den_acc[...] = jnp.zeros_like(den_acc)

    logits = lax.dot_general(anchor_ref[...], contrast_ref[...], _DOT_DNUMS,
                             preferred_element_type=jnp.float32)
    sim = jnp.exp(logits * inv_temp)
    mask_f = mask_ref[...].astype(jnp.float32)

    needs_edge = jnp.logical_and(row_start < col_start + tn,
                                 col_start < row_start + tm)
    if n_cols % tn != 0:
        needs_edge = jnp.logical_or(needs_edge, j == n_j - 1)

    @pl.when(needs_edge)
    def _slow():
        s = _edge_masked(sim, row_start, col_start, tm, tn, n_cols)
        _lane_block_accumulate(s * mask_f, s, pos_acc, den_acc, tn)

    @pl.when(jnp.logical_not(needs_edge))
    def _fast():
        _lane_block_accumulate(sim * mask_f, sim, pos_acc, den_acc, tn)

    @pl.when(j == n_j - 1)
    def _done():
        _finalize(out_ref, pos_acc, den_acc, row_start,
                  eps=0.0, tm=tm, n_rows=n_rows)


def stance_loss(features, labels=None, mask=None, *, temperature=0.07,
                contrast_mode='all', base_temperature=0.07):
    """Pallas implementation of Stance_loss.forward (base_temperature unused, as in torch)."""
    if features.ndim < 3:
        raise ValueError('`features` needs to be [bsz, n_views, ...]')
    if features.ndim > 3:
        features = features.reshape(features.shape[0], features.shape[1], -1)
    if labels is not None and mask is not None:
        raise ValueError('Cannot define both `labels` and `mask`')

    B, V, D = features.shape
    contrast_count = V
    # torch.cat(torch.unbind(features, dim=1), dim=0) -> view-major [V*B, D]
    contrast_feature = jnp.concatenate([features[:, v] for v in range(V)], axis=0)

    if contrast_mode == 'one':
        anchor_feature = features[:, 0]
        anchor_count = 1
    elif contrast_mode == 'all':
        anchor_feature = contrast_feature
        anchor_count = contrast_count
    else:
        raise ValueError('Unknown mode: {}'.format(contrast_mode))

    n_rows = B * anchor_count
    n_cols = B * contrast_count

    # Tile sizes: rows multiple of 8 with >= 2 row tiles when possible (v7x dual-TC),
    # cols multiple of 128.  TN = 512 keeps the double-buffered VMEM budget safe on
    # v7x (64 MiB) even for large D; v6e/v5e could go larger.
    TM = min(256, _round_up(max(8, -(-n_rows // 2)), 8))
    TN = min(512, _round_up(n_cols, 128))
    n_rows_p = _round_up(n_rows, TM)
    n_cols_p = _round_up(n_cols, TN)
    grid = (n_rows_p // TM, n_cols_p // TN)
    n_row_tiles = grid[0]

    # Single padded [N_p, D] feature slab; no transpose, no duplicate copy in 'all' mode.
    if contrast_mode == 'all':
        NP = max(n_rows_p, n_cols_p)
        feat_p = jnp.pad(contrast_feature, ((0, NP - n_cols), (0, 0)))
        anchor_in, contrast_in = feat_p, feat_p
    else:
        anchor_in = jnp.pad(anchor_feature, ((0, n_rows_p - n_rows), (0, 0)))
        contrast_in = jnp.pad(contrast_feature, ((0, n_cols_p - n_cols), (0, 0)))

    anchor_spec = pl.BlockSpec((TM, D), lambda i, j: (i, 0))
    contrast_spec = pl.BlockSpec((TN, D), lambda i, j: (j, 0))
    out_spec = pl.BlockSpec((1, 8, 128), lambda i, j: (i, 0, 0))
    out_shape = jax.ShapeDtypeStruct((n_row_tiles, 8, 128), jnp.float32)
    scratch = [pltpu.VMEM((TM, 128), jnp.float32),
               pltpu.VMEM((TM, 128), jnp.float32)]
    cparams = pltpu.CompilerParams(
        dimension_semantics=("parallel", "arbitrary"),
        vmem_limit_bytes=64 * 1024 * 1024)

    inv_temp = float(1.0 / temperature)

    if mask is None:
        if labels is None:
            # Identity mask == label equality with pseudo-labels arange(B), eps = 0.
            base_labels = jnp.arange(B, dtype=jnp.int32)
            eps = 0.0
        else:
            labels = jnp.asarray(labels).reshape(-1)
            if labels.shape[0] != B:
                raise ValueError('Num of labels does not match num of features')
            if jnp.issubdtype(labels.dtype, jnp.integer):
                base_labels = labels.astype(jnp.int32)
            else:
                base_labels = labels.astype(jnp.float32)
            eps = 1e-07

        row_lab = jnp.tile(base_labels, (anchor_count,))
        col_lab = jnp.tile(base_labels, (contrast_count,))
        row_lab = jnp.pad(row_lab, (0, n_rows_p - n_rows)).reshape(n_rows_p, 1)
        col_lab = jnp.pad(col_lab, (0, n_cols_p - n_cols)).reshape(1, n_cols_p)

        kernel = functools.partial(
            _stance_labels_kernel, inv_temp=inv_temp, eps=float(eps),
            tm=TM, tn=TN, n_rows=n_rows, n_cols=n_cols)

        partials = pl.pallas_call(
            kernel,
            out_shape=out_shape,
            grid_spec=pltpu.PrefetchScalarGridSpec(
                num_scalar_prefetch=0, grid=grid,
                in_specs=[pl.BlockSpec((TM, 1), lambda i, j: (i, 0)),   # row labels
                          pl.BlockSpec((1, TN), lambda i, j: (0, j)),   # col labels
                          anchor_spec,                                  # (TM, D)
                          contrast_spec],                               # (TN, D)
                out_specs=out_spec,
                scratch_shapes=scratch),
            compiler_params=cparams,
        )(row_lab, col_lab, anchor_in, contrast_in)
    else:
        # Explicit-mask fallback: stream one tiled mask (mask_neg is never built).
        # TODO(synk): when TM/TN divide B, read the base (B,B) mask with a modular
        # index_map instead of materializing the tiled [N,N] mask.
        mask = jnp.asarray(mask)
        if mask.dtype == jnp.bool_:
            mask = mask.astype(jnp.int8)   # 1-byte stream; cast to f32 in-kernel
        big_mask = jnp.tile(mask, (anchor_count, contrast_count))
        big_mask = jnp.pad(big_mask,
                           ((0, n_rows_p - n_rows), (0, n_cols_p - n_cols)))

        kernel = functools.partial(
            _stance_mask_kernel, inv_temp=inv_temp,
            tm=TM, tn=TN, n_rows=n_rows, n_cols=n_cols)

        partials = pl.pallas_call(
            kernel,
            out_shape=out_shape,
            grid_spec=pltpu.PrefetchScalarGridSpec(
                num_scalar_prefetch=0, grid=grid,
                in_specs=[pl.BlockSpec((TM, TN), lambda i, j: (i, j)),  # mask tile
                          anchor_spec,
                          contrast_spec],
                out_specs=out_spec,
                scratch_shapes=scratch),
            compiler_params=cparams,
        )(big_mask, anchor_in, contrast_in)

    # Each row tile emits sum_r log(pos_r / (pos_r + neg_r)); padded rows contribute 0.
    total = jnp.sum(partials[:, 0, 0])
    return -total / n_rows


def _stance_loss_ref(features, labels=None, *, temperature):
    """Pure-JAX reference mirroring the PyTorch forward (contrast_mode='all')."""
    B, V = features.shape[0], features.shape[1]
    feats = features.reshape(B, V, -1)
    if labels is None:
        mask = jnp.eye(B, dtype=jnp.float32)
    else:
        labels = labels.reshape(-1, 1)
        mask = (labels == labels.T).astype(jnp.float32) + 1e-07
    contrast = jnp.concatenate([feats[:, v] for v in range(V)], axis=0)
    anchor = contrast
    big_mask = jnp.tile(mask, (V, V))
    N = B * V
    logits_mask = 1.0 - jnp.eye(N, dtype=jnp.float32)
    mask_pos = big_mask * logits_mask
    mask_neg = (1.0 - big_mask) * logits_mask
    sim = jnp.exp(anchor @ contrast.T / temperature)
    pos = jnp.sum(sim * mask_pos, axis=1)
    neg = jnp.sum(sim * mask_neg, axis=1)
    return -jnp.mean(jnp.log(pos / (pos + neg)))


if __name__ == "__main__":
    key = jax.random.PRNGKey(0)
    k_feat, k_lab = jax.random.split(key)

    B, V, D = 8, 2, 32  # batch, n_views, feature dim
    temperature = 0.07

    features = jax.random.normal(k_feat, (B, V, D), dtype=jnp.float32)
    # L2-normalize along the feature dim (typical contrastive setup).
    features = features / jnp.linalg.norm(features, axis=-1, keepdims=True)
    labels = jax.random.randint(k_lab, (B,), 0, 3, dtype=jnp.int32)

    # Labels path.
    loss = jax.block_until_ready(
        stance_loss(features, labels=labels, temperature=temperature))
    ref = _stance_loss_ref(features, labels=labels, temperature=temperature)
    np.testing.assert_allclose(np.asarray(loss), np.asarray(ref),
                               rtol=5e-4, atol=1e-5)

    # Identity-mask (labels=None, mask=None) path.
    loss_eye = jax.block_until_ready(
        stance_loss(features, temperature=temperature))
    ref_eye = _stance_loss_ref(features, labels=None, temperature=temperature)
    np.testing.assert_allclose(np.asarray(loss_eye), np.asarray(ref_eye),
                               rtol=5e-4, atol=1e-5)

    print("KERNEL_OK")
</pallas_src>

<mosaic_0001>
module attributes {stable_mosaic.version = 11 : i64} {
  func.func @_stance_labels_kernel(%arg0: i32, %arg1: i32, %arg2: memref<8x1xi32, #tpu.memory_space<vmem>>, %arg3: memref<1x128xi32, #tpu.memory_space<vmem>>, %arg4: memref<8x32xf32, #tpu.memory_space<vmem>>, %arg5: memref<128x32xf32, #tpu.memory_space<vmem>>, %arg6: memref<1x8x128xf32, #tpu.memory_space<vmem>>, %arg7: memref<8x128xf32, #tpu.memory_space<vmem>>, %arg8: memref<8x128xf32, #tpu.memory_space<vmem>>) attributes {dimension_semantics = [#tpu.dimension_semantics<parallel>, #tpu.dimension_semantics<arbitrary>], iteration_bounds = array<i64: 2, 1>, scalar_prefetch = 0 : i64, scratch_operands = 2 : i64, tpu.core_type = #tpu.core_type<tc>, window_params = [{transform_indices = @transform_0, window_bounds = array<i64: 8, 1>}, {transform_indices = @transform_1, window_bounds = array<i64: 1, 128>}, {transform_indices = @transform_2, window_bounds = array<i64: 8, 32>}, {transform_indices = @transform_3, window_bounds = array<i64: 128, 32>}, {transform_indices = @transform_4, window_bounds = array<i64: 1, 8, 128>}]} {
    %c8_i32 = arith.constant 8 : i32
    %0 = arith.muli %arg0, %c8_i32 : i32
    %c128_i32 = arith.constant 128 : i32
    %1 = arith.muli %arg1, %c128_i32 : i32
    %c0_i32 = arith.constant 0 : i32
    %2 = arith.cmpi eq, %arg1, %c0_i32 : i32
    %3 = arith.extui %2 : i1 to i32
    %c0_i32_0 = arith.constant 0 : i32
    %4 = arith.cmpi ne, %3, %c0_i32_0 : i32
    scf.if %4 {
      %cst_16 = arith.constant 0.000000e+00 : f32
      %31 = vector.broadcast %cst_16 : f32 to vector<8x128xf32>
      %c0_17 = arith.constant 0 : index
      %c0_18 = arith.constant 0 : index
      %32 = vector.load %arg7[%c0_17, %c0_18] : memref<8x128xf32, #tpu.memory_space<vmem>>, vector<8x128xf32>
      tpu.vector_store %arg7[%c0_17, %c0_18], %31 {strides = array<i32>} : memref<8x128xf32, #tpu.memory_space<vmem>>, vector<8x128xf32>,
      %cst_19 = arith.constant 0.000000e+00 : f32
      %33 = vector.broadcast %cst_19 : f32 to vector<8x128xf32>
      %c0_20 = arith.constant 0 : index
      %c0_21 = arith.constant 0 : index
      %34 = vector.load %arg8[%c0_20, %c0_21] : memref<8x128xf32, #tpu.memory_space<vmem>>, vector<8x128xf32>
      tpu.vector_store %arg8[%c0_20, %c0_21], %33 {strides = array<i32>} : memref<8x128xf32, #tpu.memory_space<vmem>>, vector<8x128xf32>,
    } else {
    }
    %c0 = arith.constant 0 : index
    %c0_1 = arith.constant 0 : index
    %5 = vector.load %arg4[%c0, %c0_1] : memref<8x32xf32, #tpu.memory_space<vmem>>, vector<8x32xf32>
    %c0_2 = arith.constant 0 : index
    %c0_3 = arith.constant 0 : index
    %6 = vector.load %arg5[%c0_2, %c0_3] : memref<128x32xf32, #tpu.memory_space<vmem>>, vector<128x32xf32>
    %cst = arith.constant dense<0.000000e+00> : vector<8x128xf32>
    %7 = tpu.matmul %5, %6, %cst {dimension_numbers = #tpu.dot_dimension_numbers<[1], [1], [0], [0], [0, 0, 1, 0], [], []>} : vector<8x32xf32>, vector<128x32xf32>, vector<8x128xf32> -> vector<8x128xf32>
    %cst_4 = arith.constant 14.2857141 : f32
    %8 = vector.broadcast %cst_4 : f32 to vector<8x128xf32>
    %9 = arith.mulf %7, %8 : vector<8x128xf32>
    %10 = math.exp %9 : vector<8x128xf32>
    %c0_5 = arith.constant 0 : index
    %c0_6 = arith.constant 0 : index
    %11 = vector.load %arg2[%c0_5, %c0_6] : memref<8x1xi32, #tpu.memory_space<vmem>>, vector<8x1xi32>
    %c0_7 = arith.constant 0 : index
    %c0_8 = arith.constant 0 : index
    %12 = vector.load %arg3[%c0_7, %c0_8] : memref<1x128xi32, #tpu.memory_space<vmem>>, vector<1x128xi32>
    %13 = vector.broadcast %11 : vector<8x1xi32> to vector<8x128xi32>
    %14 = vector.broadcast %12 : vector<1x128xi32> to vector<8x128xi32>
    %15 = arith.cmpi eq, %13, %14 : vector<8x128xi32>
    %c128_i32_9 = arith.constant 128 : i32
    %16 = arith.addi %1, %c128_i32_9 : i32
    %17 = arith.cmpi slt, %0, %16 : i32
    %c8_i32_10 = arith.constant 8 : i32
    %18 = arith.addi %0, %c8_i32_10 : i32
    %19 = arith.cmpi slt, %1, %18 : i32
    %20 = arith.andi %17, %19 : i1
    %c0_i32_11 = arith.constant 0 : i32
    %21 = arith.cmpi eq, %arg1, %c0_i32_11 : i32
    %22 = arith.ori %20, %21 : i1
    %23 = arith.extui %22 : i1 to i32
    %c0_i32_12 = arith.constant 0 : i32
    %24 = arith.cmpi ne, %23, %c0_i32_12 : i32
    scf.if %24 {
      %31 = tpu.iota {dimensions = array<i32: 0>} : vector<8x128xi32>
      %32 = vector.broadcast %0 : i32 to vector<8x128xi32>
      %33 = arith.addi %32, %31 : vector<8x128xi32>
      %34 = tpu.iota {dimensions = array<i32: 1>} : vector<8x128xi32>
      %35 = vector.broadcast %1 : i32 to vector<8x128xi32>
      %36 = arith.addi %35, %34 : vector<8x128xi32>
      %37 = arith.cmpi ne, %33, %36 : vector<8x128xi32>
      %c16_i32 = arith.constant 16 : i32
      %38 = vector.broadcast %c16_i32 : i32 to vector<8x128xi32>
      %39 = arith.cmpi slt, %36, %38 : vector<8x128xi32>
      %40 = arith.andi %37, %39 : vector<8x128xi1>
      %cst_16 = arith.constant 0.000000e+00 : f32
      %41 = vector.broadcast %cst_16 : f32 to vector<8x128xf32>
      %42 = arith.select %40, %10, %41 : vector<8x128xi1>, vector<8x128xf32>
      %cst_17 = arith.constant 0.000000e+00 : f32
      %43 = vector.broadcast %cst_17 : f32 to vector<8x128xf32>
      %44 = arith.select %15, %42, %43 : vector<8x128xi1>, vector<8x128xf32>
      %c0_18 = arith.constant 0 : index
      %c0_19 = arith.constant 0 : index
      %45 = vector.load %arg7[%c0_18, %c0_19] : memref<8x128xf32, #tpu.memory_space<vmem>>, vector<8x128xf32>
      %46 = arith.addf %45, %44 : vector<8x128xf32>
      %c0_20 = arith.constant 0 : index
      %c0_21 = arith.constant 0 : index
      %47 = vector.load %arg7[%c0_20, %c0_21] : memref<8x128xf32, #tpu.memory_space<vmem>>, vector<8x128xf32>
      tpu.vector_store %arg7[%c0_20, %c0_21], %46 {strides = array<i32>} : memref<8x128xf32, #tpu.memory_space<vmem>>, vector<8x128xf32>,
      %c0_22 = arith.constant 0 : index
      %c0_23 = arith.constant 0 : index
      %48 = vector.load %arg8[%c0_22, %c0_23] : memref<8x128xf32, #tpu.memory_space<vmem>>, vector<8x128xf32>
      %49 = arith.addf %48, %42 : vector<8x128xf32>
      %c0_24 = arith.constant 0 : index
      %c0_25 = arith.constant 0 : index
      %50 = vector.load %arg8[%c0_24, %c0_25] : memref<8x128xf32, #tpu.memory_space<vmem>>, vector<8x128xf32>
      tpu.vector_store %arg8[%c0_24, %c0_25], %49 {strides = array<i32>} : memref<8x128xf32, #tpu.memory_space<vmem>>, vector<8x128xf32>,
    } else {
    }
    %true = arith.constant true
    %25 = arith.xori %22, %true : i1
    %26 = arith.extui %25 : i1 to i32
    %c0_i32_13 = arith.constant 0 : i32
    %27 = arith.cmpi ne, %26, %c0_i32_13 : i32
    scf.if %27 {
      %cst_16 = arith.constant 0.000000e+00 : f32
      %31 = vector.broadcast %cst_16 : f32 to vector<8x128xf32>
      %32 = arith.select %15, %10, %31 : vector<8x128xi1>, vector<8x128xf32>
      %c0_17 = arith.constant 0 : index
      %c0_18 = arith.constant 0 : index
      %33 = vector.load %arg7[%c0_17, %c0_18] : memref<8x128xf32, #tpu.memory_space<vmem>>, vector<8x128xf32>
      %34 = arith.addf %33, %32 : vector<8x128xf32>
      %c0_19 = arith.constant 0 : index
      %c0_20 = arith.constant 0 : index
      %35 = vector.load %arg7[%c0_19, %c0_20] : memref<8x128xf32, #tpu.memory_space<vmem>>, vector<8x128xf32>
      tpu.vector_store %arg7[%c0_19, %c0_20], %34 {strides = array<i32>} : memref<8x128xf32, #tpu.memory_space<vmem>>, vector<8x128xf32>,
      %c0_21 = arith.constant 0 : index
      %c0_22 = arith.constant 0 : index
      %36 = vector.load %arg8[%c0_21, %c0_22] : memref<8x128xf32, #tpu.memory_space<vmem>>, vector<8x128xf32>
      %37 = arith.addf %36, %10 : vector<8x128xf32>
      %c0_23 = arith.constant 0 : index
      %c0_24 = arith.constant 0 : index
      %38 = vector.load %arg8[%c0_23, %c0_24] : memref<8x128xf32, #tpu.memory_space<vmem>>, vector<8x128xf32>
      tpu.vector_store %arg8[%c0_23, %c0_24], %37 {strides = array<i32>} : memref<8x128xf32, #tpu.memory_space<vmem>>, vector<8x128xf32>,
    } else {
    }
    %c0_i32_14 = arith.constant 0 : i32
    %28 = arith.cmpi eq, %arg1, %c0_i32_14 : i32
    %29 = arith.extui %28 : i1 to i32
    %c0_i32_15 = arith.constant 0 : i32
    %30 = arith.cmpi ne, %29, %c0_i32_15 : i32
    scf.if %30 {
      %c0_16 = arith.constant 0 : index
      %c0_17 = arith.constant 0 : index
      %31 = vector.load %arg7[%c0_16, %c0_17] : memref<8x128xf32, #tpu.memory_space<vmem>>, vector<8x128xf32>
      %cst_18 = arith.constant dense<0.000000e+00> : vector<8xf32>
      %32 = vector.multi_reduction <add>, %31, %cst_18 [1] : vector<8x128xf32> to vector<8xf32>
      %33 = vector.shape_cast %32 : vector<8xf32> to vector<8x1xf32>
      %c0_19 = arith.constant 0 : index
      %c0_20 = arith.constant 0 : index
      %34 = vector.load %arg8[%c0_19, %c0_20] : memref<8x128xf32, #tpu.memory_space<vmem>>, vector<8x128xf32>
      %cst_21 = arith.constant dense<0.000000e+00> : vector<8xf32>
      %35 = vector.multi_reduction <add>, %34, %cst_21 [1] : vector<8x128xf32> to vector<8xf32>
      %36 = vector.shape_cast %35 : vector<8xf32> to vector<8x1xf32>
      %cst_22 = arith.constant 1.000000e-07 : f32
      %37 = vector.broadcast %cst_22 : f32 to vector<8x1xf32>
      %38 = arith.mulf %37, %36 : vector<8x1xf32>
      %39 = arith.addf %33, %38 : vector<8x1xf32>
      %40 = tpu.iota {dimensions = array<i32: 0>} : vector<8x1xi32>
      %41 = vector.broadcast %0 : i32 to vector<8x1xi32>
      %42 = arith.addi %41, %40 : vector<8x1xi32>
      %c16_i32 = arith.constant 16 : i32
      %43 = vector.broadcast %c16_i32 : i32 to vector<8x1xi32>
      %44 = arith.cmpi slt, %42, %43 : vector<8x1xi32>
      %45 = math.log %39 : vector<8x1xf32>
      %46 = math.log %36 : vector<8x1xf32>
      %47 = arith.subf %45, %46 : vector<8x1xf32>
      %cst_23 = arith.constant 0.000000e+00 : f32
      %48 = vector.broadcast %cst_23 : f32 to vector<8x1xf32>
      %49 = arith.select %44, %47, %48 : vector<8x1xi1>, vector<8x1xf32>
      %50 = vector.shape_cast %49 : vector<8x1xf32> to vector<1x8x1xf32>
      %cst_24 = arith.constant dense<0.000000e+00> : vector<1xf32>
      %51 = vector.multi_reduction <add>, %50, %cst_24 [1, 2] : vector<1x8x1xf32> to vector<1xf32>
      %52 = vector.shape_cast %51 : vector<1xf32> to vector<1x1x1xf32>
      %53 = vector.extract %52[0, 0, 0] : f32 from vector<1x1x1xf32>
      %54 = vector.broadcast %53 : f32 to vector<1x8x128xf32>
      %c0_25 = arith.constant 0 : index
      %c0_26 = arith.constant 0 : index
      %c0_27 = arith.constant 0 : index
      %55 = vector.load %arg6[%c0_25, %c0_26, %c0_27] : memref<1x8x128xf32, #tpu.memory_space<vmem>>, vector<1x8x128xf32>
      tpu.vector_store %arg6[%c0_25, %c0_26, %c0_27], %54 {strides = array<i32>} : memref<1x8x128xf32, #tpu.memory_space<vmem>>, vector<1x8x128xf32>,
    } else {
    }
    return
  }
  func.func @transform_0(%arg0: i32, %arg1: i32) -> (i32, i32) {
    %c0_i32 = arith.constant 0 : i32
    %c0_i32_0 = arith.constant 0 : i32
    return %arg0, %c0_i32 : i32, i32
  }
  func.func @transform_1(%arg0: i32, %arg1: i32) -> (i32, i32) {
    %c0_i32 = arith.constant 0 : i32
    %c0_i32_0 = arith.constant 0 : i32
    return %c0_i32, %arg1 : i32, i32
  }
  func.func @transform_2(%arg0: i32, %arg1: i32) -> (i32, i32) {
    %c0_i32 = arith.constant 0 : i32
    %c0_i32_0 = arith.constant 0 : i32
    return %arg0, %c0_i32 : i32, i32
  }
  func.func @transform_3(%arg0: i32, %arg1: i32) -> (i32, i32) {
    %c0_i32 = arith.constant 0 : i32
    %c0_i32_0 = arith.constant 0 : i32
    return %arg1, %c0_i32 : i32, i32
  }
  func.func @transform_4(%arg0: i32, %arg1: i32) -> (i32, i32, i32) {
    %c0_i32 = arith.constant 0 : i32
    %c0_i32_0 = arith.constant 0 : i32
    %c0_i32_1 = arith.constant 0 : i32
    return %arg0, %c0_i32, %c0_i32_0 : i32, i32, i32
  }
}

</mosaic_0001>

<llo_original>
// kernel: tpu_custom_call.1
$region0: #{tpu_custom_call.1}
  #allocation0 [shape = 'u32[]', space=smem, size = 0x4, offset = 0x4, fixed_abs, tag = 'smem constant byte address 0x4 - core index']
  #allocation1 [shape = 'u32[72,128]{1,0:T(1,128)}', space=vmem, size = 0x9000, scoped, tag = 'internal scratch']
  #allocation2 [shape = 'f32[8,128]{1,0:T(8,128)}', space=vmem, size = 0x1000, scoped, tag = 'scratch operand']
  #allocation3 [shape = 'f32[8,128]{1,0:T(8,128)}', space=vmem, size = 0x1000, scoped, tag = 'scratch operand']
  %s0 = inlined_call_operand.vmem [shape: s32[16,1], index: 0, kind: input, shape index: {}]
  %s1 = inlined_call_operand.vmem [shape: s32[1,128], index: 1, kind: input, shape index: {}]
  %s2 = inlined_call_operand.vmem [shape: f32[128,32], index: 2, kind: input, shape index: {}]
  %s3 = inlined_call_operand.vmem [shape: f32[128,32], index: 3, kind: input, shape index: {}]
  %s4 = inlined_call_operand.hbm [shape: f32[2,8,128], index: 4, kind: output, shape index: {}]
  %s5 = sld [smem:[#allocation0]]
  $region65: #{tpu_custom_call.1} parent=0
    _
  %s7 = ssub.s32 1, %s5
  %s8 = scalar_select 0, %s7, %s5
  $region1: #{tpu_custom_call.1} parent=0
    #allocation4 [shape = 'u8[8192]{0}', space=vmem, size = 0x2000, scoped, tag = 'output window, operand 0']
    #allocation5 [shape = 's32[2]{0}', space=sflag, size = 0x8, scoped, tag = 'scoped memory for tpu_custom_call.1']
    %9 = vsyncpa [#allocation5], 0
    %s10 = scalar_lea.sflag [#allocation5], 1
    %11 = vsyncpa %s10, 0
    loop: start=0, step=1, limit=4
    $region2: #{tpu_custom_call.1} parent=1 // loop_pre_header
      _
    $region3: #{tpu_custom_call.1} parent=1 // loop_header
      %s13 = sphi 0, %s17
      %p14 = scmp.ge.s32.totalorder %s13, 4
      %s20 = sphi 0, %s32
      %s21 = sphi 0, %s28
      %s22 = sphi 0, %s20
      %s23 = sphi 0, %s21
      %s24 = sphi 0, %s22
      %s25 = sphi 0, %s23
      %s35 = sphi 0, %s37
      %s38 = sphi 0, %s35
      %s39 = sphi 0, %s38
      %s55 = sphi 0, %s39
      %s61 = sphi 0, %s63
      %s64 = sphi 0, %s61
      %s65 = sphi 0, %s64
      %s81 = sphi 0, %s65
      %s87 = sphi 0, %s89
      %s90 = sphi 0, %s87
      %s91 = sphi 0, %s90
      %s107 = sphi 0, %s91
      %s113 = sphi 0, %s115
      %s116 = sphi 0, %s113
      %s117 = sphi 0, %s116
      %s133 = sphi 0, %s117
      %s139 = sphi 0, %s141
      %s142 = sphi 0, %s139
      %s143 = sphi 0, %s142
      %s159 = sphi 0, %s143
    $region4: #{tpu_custom_call.1} parent=1 // loop_header_branch
      %16 = sbr.rel (%p14) target = $region8
    $region5: #{tpu_custom_call.1} parent=1 // loop_body
      %s18 = ssub.s32 %s13, 1
      %s19 = ssub.s32 %s13, 2
      %s26 = sadd.s32 1, %s21
      %p27 = scmp.ge.s32.totalorder %s26, 1
      %s28 = scalar_select %p27, 0, %s26
      %s29 = sadd.s32 1, %s20
      %s30 = scalar_select %p27, %s29, %s20
      %p31 = scmp.ge.s32.totalorder %s30, 2
      %s32 = scalar_select %p31, 0, %s30
      %s33 = ssub.s32 %s20, %s32
      %p34 = scmp.eq.s32.totalorder %s33, 0
      %s36 = sadd.s32 %s35, 1
      %s37 = scalar_select %p34, %s35, %s36
      %p40 = pneg %p34
      %p41 = scmp.eq.s32.totalorder %s13, 1
      %p42 = por %p40, %p41
      %p43 = scmp.ne.s32.totalorder %s35, %s38
      %p44 = scmp.eq.s32.totalorder %s13, 0
      %p45 = por %p43, %p44
      %p46 = scmp.ne.s32.totalorder %s35, %s38
      %p47 = scmp.eq.s32.totalorder %s18, 1
      %p48 = por %p46, %p47
      %p49 = scmp.ne.s32.totalorder %s38, %s39
      %p50 = scmp.eq.s32.totalorder %s18, 0
      %p51 = por %p49, %p50
      %p52 = scmp.ne.s32.totalorder %s38, %s39
      %p53 = scmp.eq.s32.totalorder %s19, 1
      %p54 = por %p52, %p53
      %p56 = scmp.ne.s32.totalorder %s39, %s55
      %p57 = scmp.eq.s32.totalorder %s19, 0
      %p58 = por %p56, %p57
      %s59 = ssub.s32 %s21, %s28
      %p60 = scmp.eq.s32.totalorder %s59, 0
      %s62 = sadd.s32 %s61, 1
      %s63 = scalar_select %p60, %s61, %s62
      %p66 = pneg %p60
      %p67 = scmp.eq.s32.totalorder %s13, 1
      %p68 = por %p66, %p67
      %p69 = scmp.ne.s32.totalorder %s61, %s64
      %p70 = scmp.eq.s32.totalorder %s13, 0
      %p71 = por %p69, %p70
      %p72 = scmp.ne.s32.totalorder %s61, %s64
      %p73 = scmp.eq.s32.totalorder %s18, 1
      %p74 = por %p72, %p73
      %p75 = scmp.ne.s32.totalorder %s64, %s65
      %p76 = scmp.eq.s32.totalorder %s18, 0
      %p77 = por %p75, %p76
      %p78 = scmp.ne.s32.totalorder %s64, %s65
      %p79 = scmp.eq.s32.totalorder %s19, 1
      %p80 = por %p78, %p79
      %p82 = scmp.ne.s32.totalorder %s65, %s81
      %p83 = scmp.eq.s32.totalorder %s19, 0
      %p84 = por %p82, %p83
      %s85 = ssub.s32 %s20, %s32
      %p86 = scmp.eq.s32.totalorder %s85, 0
      %s88 = sadd.s32 %s87, 1
      %s89 = scalar_select %p86, %s87, %s88
      %p92 = pneg %p86
      %p93 = scmp.eq.s32.totalorder %s13, 1
      %p94 = por %p92, %p93
      %p95 = scmp.ne.s32.totalorder %s87, %s90
      %p96 = scmp.eq.s32.totalorder %s13, 0
      %p97 = por %p95, %p96
      %p98 = scmp.ne.s32.totalorder %s87, %s90
      %p99 = scmp.eq.s32.totalorder %s18, 1
      %p100 = por %p98, %p99
      %p101 = scmp.ne.s32.totalorder %s90, %s91
      %p102 = scmp.eq.s32.totalorder %s18, 0
      %p103 = por %p101, %p102
      %p104 = scmp.ne.s32.totalorder %s90, %s91
      %p105 = scmp.eq.s32.totalorder %s19, 1
      %p106 = por %p104, %p105
      %p108 = scmp.ne.s32.totalorder %s91, %s107
      %p109 = scmp.eq.s32.totalorder %s19, 0
      %p110 = por %p108, %p109
      %s111 = ssub.s32 %s21, %s28
      %p112 = scmp.eq.s32.totalorder %s111, 0
      %s114 = sadd.s32 %s113, 1
      %s115 = scalar_select %p112, %s113, %s114
      %p118 = pneg %p112
      %p119 = scmp.eq.s32.totalorder %s13, 1
      %p120 = por %p118, %p119
      %p121 = scmp.ne.s32.totalorder %s113, %s116
      %p122 = scmp.eq.s32.totalorder %s13, 0
      %p123 = por %p121, %p122
      %p124 = scmp.ne.s32.totalorder %s113, %s116
      %p125 = scmp.eq.s32.totalorder %s18, 1
      %p126 = por %p124, %p125
      %p127 = scmp.ne.s32.totalorder %s116, %s117
      %p128 = scmp.eq.s32.totalorder %s18, 0
      %p129 = por %p127, %p128
      %p130 = scmp.ne.s32.totalorder %s116, %s117
      %p131 = scmp.eq.s32.totalorder %s19, 1
      %p132 = por %p130, %p131
      %p134 = scmp.ne.s32.totalorder %s117, %s133
      %p135 = scmp.eq.s32.totalorder %s19, 0
      %p136 = por %p134, %p135
      %s137 = ssub.s32 %s20, %s32
      %p138 = scmp.eq.s32.totalorder %s137, 0
      %s140 = sadd.s32 %s139, 1
      %s141 = scalar_select %p138, %s139, %s140
      %p144 = pneg %p138
      %p145 = scmp.eq.s32.totalorder %s13, 1
      %p146 = por %p144, %p145
      %p147 = scmp.ne.s32.totalorder %s139, %s142
      %p148 = scmp.eq.s32.totalorder %s13, 0
      %p149 = por %p147, %p148
      %p150 = scmp.ne.s32.totalorder %s139, %s142
      %p151 = scmp.eq.s32.totalorder %s18, 1
      %p152 = por %p150, %p151
      %p153 = scmp.ne.s32.totalorder %s142, %s143
      %p154 = scmp.eq.s32.totalorder %s18, 0
      %p155 = por %p153, %p154
      %p156 = scmp.ne.s32.totalorder %s142, %s143
      %p157 = scmp.eq.s32.totalorder %s19, 1
      %p158 = por %p156, %p157
      %p160 = scmp.ne.s32.totalorder %s143, %s159
      %p161 = scmp.eq.s32.totalorder %s19, 0
      %p162 = por %p160, %p161
      %p163 = scmp.le.s32.totalorder 1, %s13
      %p164 = scmp.lt.s32.totalorder %s13, 3
      %p165 = pnand %p163, %p164
      %p166 = pneg %p165
      // Predicated region
      $region9: #{tpu_custom_call.1} parent=5 // pred_check
        _
      $region10: #{tpu_custom_call.1} parent=5 // pred_check_branch
        %168 = sbr.rel (%p165) target = $region12
      $region11: #{tpu_custom_call.1} parent=5 // pred_region
        %s169 = ssub.s32 %s13, 1
        // Predicated region
        $region13: #{tpu_custom_call.1} parent=11 // pred_check
          %p170 = pneg %p77
        $region14: #{tpu_custom_call.1} parent=11 // pred_check_branch
          %172 = sbr.rel (%p170) target = $region16
        $region15: #{tpu_custom_call.1} parent=11 // pred_region
          %p173 = scmp.lt.s32.totalorder %s23, 0
          %s174 = scalar_select %p173, %s23, 0
          %s175 = scalar_lea.vmem %s1, %s174
        $region16: #{tpu_custom_call.1} parent=11 // pred_fallthru
          _
        // Predicated region
        $region17: #{tpu_custom_call.1} parent=11 // pred_check
          %p176 = pneg %p129
        $region18: #{tpu_custom_call.1} parent=11 // pred_check_branch
          %178 = sbr.rel (%p176) target = $region20
        $region19: #{tpu_custom_call.1} parent=11 // pred_region
          %s179 = smul.u32 16, %s23
          %p180 = scmp.lt.s32.totalorder %s179, 15
          %s181 = scalar_select %p180, %s179, 15
          %s182 = smul.addr %s181, 8
          %s183 = scalar_lea.vmem %s3, %s182
          %s184 = smul.u32 16, %s23
        $region20: #{tpu_custom_call.1} parent=11 // pred_fallthru
          _
      $region12: #{tpu_custom_call.1} parent=5 // pred_fallthru
        _
      %p185 = scmp.lt.s32.totalorder %s13, 2
      // Predicated region
      $region21: #{tpu_custom_call.1} parent=5 // pred_check
        %p186 = pneg %p185
      $region22: #{tpu_custom_call.1} parent=5 // pred_check_branch
        %188 = sbr.rel (%p186) target = $region24
      $region23: #{tpu_custom_call.1} parent=5 // pred_region
        // Predicated region
        $region25: #{tpu_custom_call.1} parent=23 // pred_check
          %p189 = pneg %p45
        $region26: #{tpu_custom_call.1} parent=23 // pred_check_branch
          %191 = sbr.rel (%p189) target = $region28
        $region27: #{tpu_custom_call.1} parent=23 // pred_region
          %p192 = scmp.lt.s32.totalorder %s20, 1
          %s193 = scalar_select %p192, %s20, 1
          %s194 = smul.addr %s193, 8
          %s195 = scalar_lea.vmem %s0, %s194
        $region28: #{tpu_custom_call.1} parent=23 // pred_fallthru
          _
        // Predicated region
        $region29: #{tpu_custom_call.1} parent=23 // pred_check
          %p196 = pneg %p97
        $region30: #{tpu_custom_call.1} parent=23 // pred_check_branch
          %198 = sbr.rel (%p196) target = $region32
        $region31: #{tpu_custom_call.1} parent=23 // pred_region
          %p199 = scmp.lt.s32.totalorder %s20, 15
          %s200 = scalar_select %p199, %s20, 15
          %s201 = smul.addr %s200, 8
          %s202 = scalar_lea.vmem %s2, %s201
        $region32: #{tpu_custom_call.1} parent=23 // pred_fallthru
          _
      $region24: #{tpu_custom_call.1} parent=5 // pred_fallthru
        _
      %p203 = scmp.le.s32.totalorder 1, %s13
      %p204 = scmp.lt.s32.totalorder %s13, 3
      %p205 = pnand %p203, %p204
      %p206 = pneg %p205
      // Predicated region
      $region33: #{tpu_custom_call.1} parent=5 // pred_check
        _
      $region34: #{tpu_custom_call.1} parent=5 // pred_check_branch
        %208 = sbr.rel (%p205) target = $region36
      $region35: #{tpu_custom_call.1} parent=5 // pred_region
        %s209 = ssub.s32 %s13, 1
        %p210 = scmp.lt.s32.totalorder %s22, 1
        %s211 = scalar_select %p210, %s22, 1
        %s212 = smul.addr %s211, 8
        %s213 = scalar_lea.vmem %s0, %s212
        %p214 = pneg %p51
        %p215 = pneg %p48
        %p216 = scmp.lt.s32.totalorder %s23, 0
        %s217 = scalar_select %p216, %s23, 0
        %s218 = scalar_lea.vmem %s1, %s217
        %p219 = pneg %p77
        %p220 = pneg %p74
        %p221 = scmp.lt.s32.totalorder %s22, 15
        %s222 = scalar_select %p221, %s22, 15
        %s223 = smul.addr %s222, 8
        %s224 = scalar_lea.vmem %s2, %s223
        %p225 = pneg %p103
        %p226 = pneg %p100
        %s227 = smul.u32 16, %s23
        %p228 = scmp.lt.s32.totalorder %s227, 15
        %s229 = scalar_select %p228, %s227, 15
        %s230 = smul.addr %s229, 8
        %s231 = scalar_lea.vmem %s3, %s230
        %p232 = pneg %p129
        %p233 = pneg %p126
        %p234 = pneg %p155
        %p235 = pneg %p152
        %s236 = sand.u32 %s142, 1
        %s237 = scalar_lea.sflag [#allocation5], %s236
        %s238 = sand.u32 %s142, 1
        %s239 = smul.addr %s238, 8
        %s240 = scalar_lea.vmem [#allocation4], %s239
        %p241 = scmp.lt.s32.totalorder %s22, 1
        %s242 = scalar_select %p241, %s22, 1
        %s243 = smul.addr %s242, 8
        %s244 = scalar_lea.vmem %s0, %s243
        %p245 = scmp.lt.s32.totalorder %s23, 0
        %s246 = scalar_select %p245, %s23, 0
        %s247 = scalar_lea.vmem %s1, %s246
        %p248 = scmp.lt.s32.totalorder %s22, 15
        %s249 = scalar_select %p248, %s22, 15
        %s250 = smul.addr %s249, 8
        %s251 = scalar_lea.vmem %s2, %s250
        %s252 = smul.u32 16, %s23
        %p253 = scmp.lt.s32.totalorder %s252, 15
        %s254 = scalar_select %p253, %s252, 15
        %s255 = smul.addr %s254, 8
        %s256 = scalar_lea.vmem %s3, %s255
        %s257 = smul.u32 16, %s23
        %s258 = smul.u32 %s22, 8
        %s259 = smul.u32 %s23, 128
        %p260 = scmp.eq.s32.totalorder %s23, 0
        // Predicated region
        $region37: #{tpu_custom_call.1} parent=35 // pred_check
          %p261 = pneg %p260
        $region38: #{tpu_custom_call.1} parent=35 // pred_check_branch
          %263 = sbr.rel (%p261) target = $region40
        $region39: #{tpu_custom_call.1} parent=35 // pred_region
          %264 = vst [vmem:[#allocation2] sm:$0xff] 0.0
          %265 = vst [vmem:[#allocation3] sm:$0xff] 0.0
        $region40: #{tpu_custom_call.1} parent=35 // pred_fallthru
          _
        %v266 = vld [vmem:[%s251] sm:$0xff]
        %v267 = vld [vmem:[%s256] sm:$0xff]
        %v268 = vld [vmem:[%s256 + $0x8] sm:$0xff]
        %v269 = vld [vmem:[%s256 + $0x10] sm:$0xff]
        %v270 = vld [vmem:[%s256 + $0x18] sm:$0xff]
        %v271 = vld [vmem:[%s256 + $0x20] sm:$0xff]
        %v272 = vld [vmem:[%s256 + $0x28] sm:$0xff]
        %v273 = vld [vmem:[%s256 + $0x30] sm:$0xff]
        %v274 = vld [vmem:[%s256 + $0x38] sm:$0xff]
        %v275 = vld [vmem:[%s256 + $0x40] sm:$0xff]
        %v276 = vld [vmem:[%s256 + $0x48] sm:$0xff]
        %v277 = vld [vmem:[%s256 + $0x50] sm:$0xff]
        %v278 = vld [vmem:[%s256 + $0x58] sm:$0xff]
        %v279 = vld [vmem:[%s256 + $0x60] sm:$0xff]
        %v280 = vld [vmem:[%s256 + $0x68] sm:$0xff]
        %v281 = vld [vmem:[%s256 + $0x70] sm:$0xff]
        %v282 = vld [vmem:[%s256 + $0x78] sm:$0xff]
        %vm283 = vcmask 261120
        %v285 = vsel %vm283, %v266, 0
        %v288 = vsel %vm283, %v267, 0
        %v291 = vsel %vm283, %v268, 0
        %v294 = vsel %vm283, %v269, 0
        %v297 = vsel %vm283, %v270, 0
        %v300 = vsel %vm283, %v271, 0
        %v303 = vsel %vm283, %v272, 0
        %v306 = vsel %vm283, %v273, 0
        %v309 = vsel %vm283, %v274, 0
        %v312 = vsel %vm283, %v275, 0
        %v315 = vsel %vm283, %v276, 0
        %v318 = vsel %vm283, %v277, 0
        %v321 = vsel %vm283, %v278, 0
        %v324 = vsel %vm283, %v279, 0
        %v327 = vsel %vm283, %v280, 0
        %v330 = vsel %vm283, %v281, 0
        %v333 = vsel %vm283, %v282, 0
        %335 = vmatpush.xpose.msra.mxu0 %v333
        %336 = vmatpush.xpose.msra.mxu0 %v330
        %337 = vmatpush.xpose.msra.mxu0 %v327
        %338 = vmatpush.xpose.msra.mxu0 %v324
        %339 = vmatpush.xpose.msra.mxu0 %v321
        %340 = vmatpush.xpose.msra.mxu0 %v318
        %341 = vmatpush.xpose.msra.mxu0 %v315
        %342 = vmatpush.xpose.msra.mxu0 %v312
        %343 = vmatpush.xpose.msra.mxu0 %v309
        %344 = vmatpush.xpose.msra.mxu0 %v306
        %345 = vmatpush.xpose.msra.mxu0 %v303
        %346 = vmatpush.xpose.msra.mxu0 %v300
        %347 = vmatpush.xpose.msra.mxu0 %v297
        %348 = vmatpush.xpose.msra.mxu0 %v294
        %349 = vmatpush.xpose.msra.mxu0 %v291
        %350 = vmatpush.xpose.msra.mxu0 %v288
        %351 = vmatmul.f32.gmra.mxu0 %v285
        %v352 = vpop.f32.mrf.mxu0
        %v353 = vadd.f32 0.0, %v352
        %354 = vdwg.mxu0
        %v355 = vmul.f32 %v353, 14.285714
        %v356 = vmul.f32 %v355, 1.442695
        %v357 = vpow.pop %v356
        %v358 = vld [vmem:[%s244] sm:$0xff]
        %v359 = vld [vmem:[%s247] sm:$0x1]
        %360 = vset.pattern.permute.xlu0 0
        %361 = vperm.xlu0 %360, %v358
        %v362 = vpop.permute.xlu0 %361
        %v363 = vperm.slane %v359, 0
        %vm364 = vcmp.eq.s32.totalorder %v362, %v363
        %s365 = sadd.s32 %s259, 128
        %p366 = scmp.lt.s32.totalorder %s258, %s365
        %s367 = sadd.s32 %s258, 8
        %p368 = scmp.lt.s32.totalorder %s259, %s367
        %p369 = pnand %p366, %p368
        %p370 = pneg %p369
        %p371 = por %p370, %p260
        // Predicated region
        $region41: #{tpu_custom_call.1} parent=35 // pred_check
          %p372 = pneg %p371
        $region42: #{tpu_custom_call.1} parent=35 // pred_check_branch
          %374 = sbr.rel (%p372) target = $region44
        $region43: #{tpu_custom_call.1} parent=35 // pred_region
          %v375 = vlaneseq
          %v376 = vshrl.u32 %v375, 7
          %v377 = vstv %s258
          %v378 = vadd.s32 %v377, %v376
          %v379 = vlaneseq
          %v380 = vand.u32 %v379, 127
          %v381 = vstv %s259
          %v382 = vadd.s32 %v381, %v380
          %vm383 = vcmp.ne.s32.totalorder %v378, %v382
          %vm384 = vcmp.lt.s32.totalorder %v382, 16
          %vm385 = vmand %vm383, %vm384
          %v386 = vsel %vm385, %v357, 0.0
          %v387 = vsel %vm364, %v386, 0.0
          %v388 = vld [vmem:[#allocation2] sm:$0xff]
          %v389 = vadd.f32 %v388, %v387
          %390 = vst [vmem:[#allocation2] sm:$0xff] %v389
          %v391 = vld [vmem:[#allocation3] sm:$0xff]
          %v392 = vadd.f32 %v391, %v386
          %393 = vst [vmem:[#allocation3] sm:$0xff] %v392
        $region44: #{tpu_custom_call.1} parent=35 // pred_fallthru
          _
        %p394 = pneg %p371
        // Predicated region
        $region45: #{tpu_custom_call.1} parent=35 // pred_check
          _
        $region46: #{tpu_custom_call.1} parent=35 // pred_check_branch
          %396 = sbr.rel (%p371) target = $region48
        $region47: #{tpu_custom_call.1} parent=35 // pred_region
          %v397 = vsel %vm364, %v357, 0.0
          %v398 = vld [vmem:[#allocation2] sm:$0xff]
          %v399 = vadd.f32 %v398, %v397
          %400 = vst [vmem:[#allocation2] sm:$0xff] %v399
          %v401 = vld [vmem:[#allocation3] sm:$0xff]
          %v402 = vadd.f32 %v401, %v357
          %403 = vst [vmem:[#allocation3] sm:$0xff] %v402
        $region48: #{tpu_custom_call.1} parent=35 // pred_fallthru
          _
        // Predicated region
        $region49: #{tpu_custom_call.1} parent=35 // pred_check
          %p404 = pneg %p260
        $region50: #{tpu_custom_call.1} parent=35 // pred_check_branch
          %406 = sbr.rel (%p404) target = $region52
        $region51: #{tpu_custom_call.1} parent=35 // pred_region
          %v407 = vld [vmem:[#allocation2] sm:$0xff]
          %408 = vadd.xlane.f32.xlu0 %v407
          %v409 = vpop.xlane.xlu0 %408
          %v410 = vld [vmem:[#allocation3] sm:$0xff]
          %411 = vadd.xlane.f32.xlu0 %v410
          %v412 = vpop.xlane.xlu0 %411
          %v413 = vmul.f32 %v412, 1e-07
          %v414 = vadd.f32 %v409, %v413
          %v415 = vlaneseq
          %v416 = vshrl.u32 %v415, 7
          %v417 = vstv %s258
          %v418 = vadd.s32 %v417, %v416
          %vm419 = vcmp.lt.s32.totalorder %v418, 16
          %v420 = vlog2.pop %v414
          %v421 = vmul.f32 %v420, 0.6931472
          %v422 = vlog2.pop %v412
          %v423 = vmul.f32 %v422, 0.6931472
          %v424 = vsub.f32 %v421, %v423
          %v425 = vsel %vm419, %v424, 0.0
          %vm426 = vcmask 7168
          %v427 = vsel %vm426, %v425, 0.0
          %428 = vadd.xlane.f32.xlu0 %v427
          %v429 = vpop.xlane.xlu0 %428
          %v430 = vrot.slane %v429, 4
          %v431 = vadd.f32 %v429, %v430
          %v432 = vrot.slane %v431, 2
          %v433 = vadd.f32 %v431, %v432
          %v434 = vrot.slane %v433, 1
          %v435 = vadd.f32 %v433, %v434
          %s436 = vtos %v435
          %v437 = vstv %s436
          %438 = vst [vmem:[%s240] sm:$0xff] %v437
        $region52: #{tpu_custom_call.1} parent=35 // pred_fallthru
          _
        %s439 = sand.u32 %s142, 1
        %s440 = scalar_lea.sflag [#allocation5], %s439
        %s441 = sand.u32 %s142, 1
        %s442 = smul.addr %s441, 8
        %s443 = scalar_lea.vmem [#allocation4], %s442
        // Predicated region
        $region53: #{tpu_custom_call.1} parent=35 // pred_check
          %p444 = pneg %p152
        $region54: #{tpu_custom_call.1} parent=35 // pred_check_branch
          %446 = sbr.rel (%p444) target = $region56
        $region55: #{tpu_custom_call.1} parent=35 // pred_region
          %448 = vsyncadd %s440, 0
          %s449 = smul.addr %s22, 8
          %s450 = scalar_lea.hbm %s4, %s449
          %s452 = sshll.u32 %s443, 4
          %s453 = int_to_ptr.vmem [resolvable:$true] %s452
          %s454 = sshll.u32 %s450, 4
          %s455 = int_to_ptr.hbm [resolvable:$true] %s454
          %457 = dma.vmem_to_hbm [thread:$0]  %s453, 128, %s455, %s440
        $region56: #{tpu_custom_call.1} parent=35 // pred_fallthru
          _
      $region36: #{tpu_custom_call.1} parent=5 // pred_fallthru
        _
      %p458 = scmp.le.s32.totalorder 2, %s13
      // Predicated region
      $region57: #{tpu_custom_call.1} parent=5 // pred_check
        %p459 = pneg %p458
      $region58: #{tpu_custom_call.1} parent=5 // pred_check_branch
        %461 = sbr.rel (%p459) target = $region60
      $region59: #{tpu_custom_call.1} parent=5 // pred_region
        %s462 = ssub.s32 %s13, 2
        // Predicated region
        $region61: #{tpu_custom_call.1} parent=59 // pred_check
          %p463 = pneg %p158
        $region62: #{tpu_custom_call.1} parent=59 // pred_check_branch
          %465 = sbr.rel (%p463) target = $region64
        $region63: #{tpu_custom_call.1} parent=59 // pred_region
          %s466 = sand.u32 %s143, 1
          %s467 = scalar_lea.sflag [#allocation5], %s466
          %s468 = sand.u32 %s143, 1
          %s469 = smul.addr %s468, 8
          %s470 = scalar_lea.vmem [#allocation4], %s469
          %472 = dma.done %s467, 128
        $region64: #{tpu_custom_call.1} parent=59 // pred_fallthru
          _
      $region60: #{tpu_custom_call.1} parent=5 // pred_fallthru
        _
    $region6: #{tpu_custom_call.1} parent=1 // loop_footer
      %s17 = sadd.s32 1, %s13
    $region7: #{tpu_custom_call.1} parent=1 // loop_footer_branch
      %12 = sbr.rel target = $region3
    $region8: #{tpu_custom_call.1} parent=1 // loop_exit
      _
    %473 = vsyncpa [#allocation5], 1
    %s474 = scalar_lea.sflag [#allocation5], 1
    %475 = vsyncpa %s474, 1

</llo_original>
